<compile_context>
chip_gen: v5e
topology: v5e:2x2
jax: 0.10.0
libtpu: 0.0.40
codegen_flags: <defaults>
</compile_context>

<pallas_src>
import functools

import jax
import jax.numpy as jnp
from jax.experimental import pallas as pl
from jax.experimental.pallas import tpu as pltpu

# ----------------------------- problem sizes -------------------------------
B = 8                       # batch (>= 8 rows so sublanes/MXU rows are used)
D_IN = 64                   # flattened input features (synthetic stand-in)
CLS = [D_IN, 32, 10]        # classify_layer  (input -> hidden -> num classes)
ENC = [D_IN, 48]            # encoder_layer_sizes (ENC[0] += CLS[-1] inside VAE)
LATENT = 16                 # latent_size
DEC = [48, D_IN]            # decoder_layer_sizes

NUM_CLASSES = CLS[-1]
Y_PAD = 16                  # one-hot padded to 16 lanes (pad cols/rows zero -> no effect)
BN_EPS = 1e-5

# ----------------------- packed parameter slab layout ----------------------
# Weight slab: (W_ROWS, 128) f32, each weight block at an 8-aligned row offset,
# used columns start at 0 (rest of the row band is zero).
W_COLS = 128
WX_R = 0        # (64, 80)  fused [classifier L0 (64x32) | encoder L0 x-block (64x48)]
WY_R = 64       # (16, 96)  fused [encoder L0 y-block (16x48) | decoder L0 y-block (16x48)]
WC1_R = 80      # (32, 10)  classifier layer 1
WMULV_R = 112   # (48, 32)  fused [means | log_var] head
WD0Z_R = 160    # (16, 48)  decoder layer 0, z-block
WD1_R = 176     # (48, 64)  decoder output layer
W_ROWS = 224

# Bias slab: (8, 128) f32, one bias vector per row at columns 0:width.
B_BC0, B_BC1, B_BE0, B_BMULV, B_BD0, B_BD1 = 0, 1, 2, 3, 4, 5

# Activation slab columns: x | y_onehot(padded) | eps
A_X, A_Y, A_EPS = 0, D_IN, D_IN + Y_PAD                      # 0, 64, 80
# Output slab columns: recon | mu | lv | z | y0 | pad
O_RECON, O_MU, O_LV, O_Z, O_Y0 = 0, 64, 80, 96, 112
O_PAD_W = 128 - (O_Y0 + NUM_CLASSES)                         # 6 zero pad lanes


# ------------------------------ Pallas kernel ------------------------------
def vae_kernel(act_ref, w_ref, b_ref, out_ref):
    dot = functools.partial(jnp.dot, preferred_element_type=jnp.float32)

    def bn_relu(h):
        # BatchNorm1d (training mode): biased batch stats over axis 0; gamma=1,
        # beta=0 (fresh module) so the affine is the identity and dropped.
        m = jnp.mean(h, axis=0, keepdims=True)
        v = jnp.mean(jnp.square(h - m), axis=0, keepdims=True)
        return jnp.maximum((h - m) * jax.lax.rsqrt(v + BN_EPS), 0.0)

    act = act_ref[...]                               # (B, 128)
    x = act[:, A_X:A_X + D_IN]                       # (B, 64)
    y = act[:, A_Y:A_Y + Y_PAD]                      # (B, 16) zero-padded one-hot
    eps = act[:, A_EPS:A_EPS + LATENT]               # (B, 16)

    w = w_ref[...]                                   # (224, 128)
    b = b_ref[...]                                   # (8, 128)

    wx = w[WX_R:WX_R + D_IN, 0:CLS[1] + ENC[1]]      # (64, 80)
    wy = w[WY_R:WY_R + Y_PAD, 0:ENC[1] + DEC[0]]     # (16, 96) rows 10..15 zero
    wc1 = w[WC1_R:WC1_R + CLS[1], 0:NUM_CLASSES]     # (32, 10)
    wmulv = w[WMULV_R:WMULV_R + ENC[1], 0:2 * LATENT]
    wd0z = w[WD0Z_R:WD0Z_R + LATENT, 0:DEC[0]]
    wd1 = w[WD1_R:WD1_R + DEC[0], 0:DEC[1]]

    bc0 = b[B_BC0:B_BC0 + 1, 0:CLS[1]]
    bc1 = b[B_BC1:B_BC1 + 1, 0:NUM_CLASSES]
    be0 = b[B_BE0:B_BE0 + 1, 0:ENC[1]]
    bmulv = b[B_BMULV:B_BMULV + 1, 0:2 * LATENT]
    bd0 = b[B_BD0:B_BD0 + 1, 0:DEC[0]]
    bd1 = b[B_BD1:B_BD1 + 1, 0:DEC[1]]

    # ---- fused MXU ops shared by classifier / encoder / decoder ----
    hx = dot(x, wx)              # (B, 80): [:, :32] classifier L0, [:, 32:80] encoder x
    hy = dot(y, wy)              # (B, 96): [:, :48] encoder y,    [:, 48:96] decoder y

    # ---- Classifier: [Linear -> BN -> ReLU] x 2, then Softmax(dim=-1) ----
    h = bn_relu(hx[:, 0:CLS[1]] + bc0)
    h2 = bn_relu(dot(h, wc1) + bc1)                   # BN+ReLU on the last layer too
    e = jnp.exp(h2 - jnp.max(h2, axis=-1, keepdims=True))
    y0 = e * pl.reciprocal(jnp.sum(e, axis=-1, keepdims=True), approx=True)

    # ---- Encoder on cat([x, y], dim=1) via split-weight matmuls ----
    h = bn_relu(hx[:, CLS[1]:CLS[1] + ENC[1]] + hy[:, 0:ENC[1]] + be0)
    mulv = dot(h, wmulv) + bmulv                      # fused [mu | log_var] head
    mu = mulv[:, 0:LATENT]
    lv = mulv[:, LATENT:2 * LATENT]

    # ---- Reparameterize: z = mu + eps * exp(0.5 * log_var) ----
    z = mu + eps * jnp.exp(0.5 * lv)

    # ---- Decoder on cat([z, y], dim=1): Linear -> BN -> ReLU, Linear -> Sigmoid ----
    h = bn_relu(dot(z, wd0z) + hy[:, ENC[1]:ENC[1] + DEC[0]] + bd0)
    rlogits = dot(h, wd1) + bd1
    recon = 0.5 + 0.5 * jnp.tanh(0.5 * rlogits)       # sigmoid via EUP tanh

    # ---- single lane-dense (B, 128) output store ----
    pad = jnp.zeros((recon.shape[0], O_PAD_W), jnp.float32)
    out_ref[...] = jnp.concatenate([recon, mu, lv, z, y0, pad], axis=1)


# -------------------------------- wrapper ----------------------------------
def semisupervised_vae_forward(x, y, eps, w_slab, b_slab):
    x = x.reshape(-1, D_IN).astype(jnp.float32)       # mirrors x.view(-1, 1274*21)
    bsz = x.shape[0]

    # Pack x / one-hot-y (padded to 16 lanes) / eps into one (bsz, 128) slab.
    act = jnp.zeros((bsz, 128), jnp.float32)
    act = act.at[:, A_X:A_X + D_IN].set(x)
    act = act.at[:, A_Y:A_Y + NUM_CLASSES].set(y.astype(jnp.float32))
    act = act.at[:, A_EPS:A_EPS + LATENT].set(eps.astype(jnp.float32))

    vmem = pl.BlockSpec(memory_space=pltpu.MemorySpace.VMEM)

    mm = (D_IN * (CLS[1] + ENC[1]) + Y_PAD * (ENC[1] + DEC[0])
          + CLS[1] * NUM_CLASSES + ENC[1] * 2 * LATENT
          + LATENT * DEC[0] + DEC[0] * DEC[1])
    cost = pl.CostEstimate(
        flops=2 * bsz * mm,
        transcendentals=bsz * (NUM_CLASSES + LATENT + DEC[1]) + 4 * 256,
        bytes_accessed=4 * (w_slab.size + b_slab.size + act.size + bsz * 128),
    )

    out = pl.pallas_call(
        vae_kernel,
        out_shape=jax.ShapeDtypeStruct((bsz, 128), jnp.float32),
        in_specs=[vmem, vmem, vmem],
        out_specs=vmem,
        cost_estimate=cost,
    )(act, w_slab, b_slab)

    recon_x = out[:, O_RECON:O_RECON + DEC[-1]]
    means = out[:, O_MU:O_MU + LATENT]
    log_var = out[:, O_LV:O_LV + LATENT]
    z = out[:, O_Z:O_Z + LATENT]
    y0 = out[:, O_Y0:O_Y0 + NUM_CLASSES]
    return recon_x, means, log_var, z, y0


# ----------------------- deterministic parameter init ----------------------
def init_params(key):
    def linear(k, fan_in, fan_out):
        k1, k2 = jax.random.split(k)
        bound = 1.0 / float(fan_in) ** 0.5
        w = jax.random.uniform(k1, (fan_in, fan_out), jnp.float32, -bound, bound)
        bvec = jax.random.uniform(k2, (fan_out,), jnp.float32, -bound, bound)
        return w, bvec

    keys = jax.random.split(key, 7)

    wc0, bc0 = linear(keys[0], CLS[0], CLS[1])
    wc1, bc1 = linear(keys[1], CLS[1], CLS[2])

    enc_in = ENC[0] + NUM_CLASSES
    we0, be0 = linear(keys[2], enc_in, ENC[1])
    we0x, we0y = we0[:ENC[0]], we0[ENC[0]:]
    wmu, bmu = linear(keys[3], ENC[1], LATENT)
    wlv, blv = linear(keys[4], ENC[1], LATENT)

    dec_in = LATENT + NUM_CLASSES
    wd0, bd0 = linear(keys[5], dec_in, DEC[0])
    wd0z, wd0y = wd0[:LATENT], wd0[LATENT:]
    wd1, bd1 = linear(keys[6], DEC[0], DEC[1])

    # ---- pack into one weight slab and one bias slab ----
    W = jnp.zeros((W_ROWS, W_COLS), jnp.float32)
    W = W.at[WX_R:WX_R + D_IN, 0:CLS[1]].set(wc0)
    W = W.at[WX_R:WX_R + D_IN, CLS[1]:CLS[1] + ENC[1]].set(we0x)
    W = W.at[WY_R:WY_R + NUM_CLASSES, 0:ENC[1]].set(we0y)
    W = W.at[WY_R:WY_R + NUM_CLASSES, ENC[1]:ENC[1] + DEC[0]].set(wd0y)
    W = W.at[WC1_R:WC1_R + CLS[1], 0:NUM_CLASSES].set(wc1)
    W = W.at[WMULV_R:WMULV_R + ENC[1], 0:LATENT].set(wmu)
    W = W.at[WMULV_R:WMULV_R + ENC[1], LATENT:2 * LATENT].set(wlv)
    W = W.at[WD0Z_R:WD0Z_R + LATENT, 0:DEC[0]].set(wd0z)
    W = W.at[WD1_R:WD1_R + DEC[0], 0:DEC[1]].set(wd1)

    Bm = jnp.zeros((8, 128), jnp.float32)
    Bm = Bm.at[B_BC0, :CLS[1]].set(bc0)
    Bm = Bm.at[B_BC1, :NUM_CLASSES].set(bc1)
    Bm = Bm.at[B_BE0, :ENC[1]].set(be0)
    Bm = Bm.at[B_BMULV, :LATENT].set(bmu)
    Bm = Bm.at[B_BMULV, LATENT:2 * LATENT].set(blv)
    Bm = Bm.at[B_BD0, :DEC[0]].set(bd0)
    Bm = Bm.at[B_BD1, :DEC[1]].set(bd1)

    return W, Bm


# ---------------------------------- main ------------------------------------
if __name__ == "__main__":
    key = jax.random.PRNGKey(0)
    k_x, k_y, k_eps, k_params = jax.random.split(key, 4)

    x = jax.random.normal(k_x, (B, D_IN), jnp.float32)                # data
    labels = jax.random.randint(k_y, (B,), 0, NUM_CLASSES)
    y = jax.nn.one_hot(labels, NUM_CLASSES, dtype=jnp.float32)        # labels
    eps = jax.random.normal(k_eps, (B, LATENT), jnp.float32)          # reparam noise

    w_slab, b_slab = init_params(k_params)

    recon_x, means, log_var, z, y0 = semisupervised_vae_forward(x, y, eps, w_slab, b_slab)
    jax.block_until_ready((recon_x, means, log_var, z, y0))

    assert recon_x.shape == (B, DEC[-1])
    assert means.shape == (B, LATENT) and log_var.shape == (B, LATENT)
    assert z.shape == (B, LATENT) and y0.shape == (B, NUM_CLASSES)
    print("KERNEL_OK")
</pallas_src>

<mosaic_0001>
module attributes {stable_mosaic.version = 11 : i64} {
  func.func @vae_kernel(%arg0: memref<8x128xf32, #tpu.memory_space<vmem>>, %arg1: memref<224x128xf32, #tpu.memory_space<vmem>>, %arg2: memref<8x128xf32, #tpu.memory_space<vmem>>, %arg3: memref<8x128xf32, #tpu.memory_space<vmem>>) attributes {dimension_semantics = [], scalar_prefetch = 0 : i64, scratch_operands = 0 : i64, tpu.core_type = #tpu.core_type<tc>} {
    %c0 = arith.constant 0 : index
    %c0_0 = arith.constant 0 : index
    %0 = vector.load %arg0[%c0, %c0_0] : memref<8x128xf32, #tpu.memory_space<vmem>>, vector<8x128xf32>
    %1 = vector.extract_strided_slice %0 {offsets = [0, 0], sizes = [8, 64], strides = [1, 1]} : vector<8x128xf32> to vector<8x64xf32>
    %2 = vector.extract_strided_slice %0 {offsets = [0, 64], sizes = [8, 16], strides = [1, 1]} : vector<8x128xf32> to vector<8x16xf32>
    %3 = vector.extract_strided_slice %0 {offsets = [0, 80], sizes = [8, 16], strides = [1, 1]} : vector<8x128xf32> to vector<8x16xf32>
    %c0_1 = arith.constant 0 : index
    %c0_2 = arith.constant 0 : index
    %4 = vector.load %arg1[%c0_1, %c0_2] : memref<224x128xf32, #tpu.memory_space<vmem>>, vector<224x128xf32>
    %c0_3 = arith.constant 0 : index
    %c0_4 = arith.constant 0 : index
    %5 = vector.load %arg2[%c0_3, %c0_4] : memref<8x128xf32, #tpu.memory_space<vmem>>, vector<8x128xf32>
    %6 = vector.extract_strided_slice %4 {offsets = [0, 0], sizes = [64, 80], strides = [1, 1]} : vector<224x128xf32> to vector<64x80xf32>
    %7 = vector.extract_strided_slice %4 {offsets = [64, 0], sizes = [16, 96], strides = [1, 1]} : vector<224x128xf32> to vector<16x96xf32>
    %8 = vector.extract_strided_slice %4 {offsets = [80, 0], sizes = [32, 10], strides = [1, 1]} : vector<224x128xf32> to vector<32x10xf32>
    %9 = vector.extract_strided_slice %4 {offsets = [112, 0], sizes = [48, 32], strides = [1, 1]} : vector<224x128xf32> to vector<48x32xf32>
    %10 = vector.extract_strided_slice %4 {offsets = [160, 0], sizes = [16, 48], strides = [1, 1]} : vector<224x128xf32> to vector<16x48xf32>
    %11 = vector.extract_strided_slice %4 {offsets = [176, 0], sizes = [48, 64], strides = [1, 1]} : vector<224x128xf32> to vector<48x64xf32>
    %12 = vector.extract_strided_slice %5 {offsets = [0, 0], sizes = [1, 32], strides = [1, 1]} : vector<8x128xf32> to vector<1x32xf32>
    %13 = vector.extract_strided_slice %5 {offsets = [1, 0], sizes = [1, 10], strides = [1, 1]} : vector<8x128xf32> to vector<1x10xf32>
    %14 = vector.extract_strided_slice %5 {offsets = [2, 0], sizes = [1, 48], strides = [1, 1]} : vector<8x128xf32> to vector<1x48xf32>
    %15 = vector.extract_strided_slice %5 {offsets = [3, 0], sizes = [1, 32], strides = [1, 1]} : vector<8x128xf32> to vector<1x32xf32>
    %16 = vector.extract_strided_slice %5 {offsets = [4, 0], sizes = [1, 48], strides = [1, 1]} : vector<8x128xf32> to vector<1x48xf32>
    %17 = vector.extract_strided_slice %5 {offsets = [5, 0], sizes = [1, 64], strides = [1, 1]} : vector<8x128xf32> to vector<1x64xf32>
    %cst = arith.constant dense<0.000000e+00> : vector<8x80xf32>
    %18 = tpu.matmul %1, %6, %cst {dimension_numbers = #tpu.dot_dimension_numbers<[1], [0], [0], [1], [0, 0, 1, 1], [], []>} : vector<8x64xf32>, vector<64x80xf32>, vector<8x80xf32> -> vector<8x80xf32>
    %cst_5 = arith.constant dense<0.000000e+00> : vector<8x96xf32>
    %19 = tpu.matmul %2, %7, %cst_5 {dimension_numbers = #tpu.dot_dimension_numbers<[1], [0], [0], [1], [0, 0, 1, 1], [], []>} : vector<8x16xf32>, vector<16x96xf32>, vector<8x96xf32> -> vector<8x96xf32>
    %20 = vector.extract_strided_slice %18 {offsets = [0, 0], sizes = [8, 32], strides = [1, 1]} : vector<8x80xf32> to vector<8x32xf32>
    %21 = vector.broadcast %12 : vector<1x32xf32> to vector<8x32xf32>
    %22 = arith.addf %20, %21 : vector<8x32xf32>
    %cst_6 = arith.constant dense<0.000000e+00> : vector<32xf32>
    %23 = vector.multi_reduction <add>, %22, %cst_6 [0] : vector<8x32xf32> to vector<32xf32>
    %24 = vector.shape_cast %23 : vector<32xf32> to vector<1x32xf32>
    %cst_7 = arith.constant 8.000000e+00 : f32
    %25 = vector.broadcast %cst_7 : f32 to vector<1x32xf32>
    %26 = arith.divf %24, %25 : vector<1x32xf32>
    %27 = vector.broadcast %26 : vector<1x32xf32> to vector<8x32xf32>
    %28 = arith.subf %22, %27 : vector<8x32xf32>
    %29 = arith.mulf %28, %28 : vector<8x32xf32>
    %cst_8 = arith.constant dense<0.000000e+00> : vector<32xf32>
    %30 = vector.multi_reduction <add>, %29, %cst_8 [0] : vector<8x32xf32> to vector<32xf32>
    %31 = vector.shape_cast %30 : vector<32xf32> to vector<1x32xf32>
    %cst_9 = arith.constant 8.000000e+00 : f32
    %32 = vector.broadcast %cst_9 : f32 to vector<1x32xf32>
    %33 = arith.divf %31, %32 : vector<1x32xf32>
    %34 = vector.broadcast %26 : vector<1x32xf32> to vector<8x32xf32>
    %35 = arith.subf %22, %34 : vector<8x32xf32>
    %cst_10 = arith.constant 9.99999974E-6 : f32
    %36 = vector.broadcast %cst_10 : f32 to vector<1x32xf32>
    %37 = arith.addf %33, %36 : vector<1x32xf32>
    %38 = math.rsqrt %37 : vector<1x32xf32>
    %39 = vector.broadcast %38 : vector<1x32xf32> to vector<8x32xf32>
    %40 = arith.mulf %35, %39 : vector<8x32xf32>
    %cst_11 = arith.constant 0.000000e+00 : f32
    %41 = vector.broadcast %cst_11 : f32 to vector<8x32xf32>
    %42 = arith.maximumf %40, %41 : vector<8x32xf32>
    %cst_12 = arith.constant dense<0.000000e+00> : vector<8x10xf32>
    %43 = tpu.matmul %42, %8, %cst_12 {dimension_numbers = #tpu.dot_dimension_numbers<[1], [0], [0], [1], [0, 0, 1, 1], [], []>} : vector<8x32xf32>, vector<32x10xf32>, vector<8x10xf32> -> vector<8x10xf32>
    %44 = vector.broadcast %13 : vector<1x10xf32> to vector<8x10xf32>
    %45 = arith.addf %43, %44 : vector<8x10xf32>
    %cst_13 = arith.constant dense<0.000000e+00> : vector<10xf32>
    %46 = vector.multi_reduction <add>, %45, %cst_13 [0] : vector<8x10xf32> to vector<10xf32>
    %47 = vector.shape_cast %46 : vector<10xf32> to vector<1x10xf32>
    %cst_14 = arith.constant 8.000000e+00 : f32
    %48 = vector.broadcast %cst_14 : f32 to vector<1x10xf32>
    %49 = arith.divf %47, %48 : vector<1x10xf32>
    %50 = vector.broadcast %49 : vector<1x10xf32> to vector<8x10xf32>
    %51 = arith.subf %45, %50 : vector<8x10xf32>
    %52 = arith.mulf %51, %51 : vector<8x10xf32>
    %cst_15 = arith.constant dense<0.000000e+00> : vector<10xf32>
    %53 = vector.multi_reduction <add>, %52, %cst_15 [0] : vector<8x10xf32> to vector<10xf32>
    %54 = vector.shape_cast %53 : vector<10xf32> to vector<1x10xf32>
    %cst_16 = arith.constant 8.000000e+00 : f32
    %55 = vector.broadcast %cst_16 : f32 to vector<1x10xf32>
    %56 = arith.divf %54, %55 : vector<1x10xf32>
    %57 = vector.broadcast %49 : vector<1x10xf32> to vector<8x10xf32>
    %58 = arith.subf %45, %57 : vector<8x10xf32>
    %cst_17 = arith.constant 9.99999974E-6 : f32
    %59 = vector.broadcast %cst_17 : f32 to vector<1x10xf32>
    %60 = arith.addf %56, %59 : vector<1x10xf32>
    %61 = math.rsqrt %60 : vector<1x10xf32>
    %62 = vector.broadcast %61 : vector<1x10xf32> to vector<8x10xf32>
    %63 = arith.mulf %58, %62 : vector<8x10xf32>
    %cst_18 = arith.constant 0.000000e+00 : f32
    %64 = vector.broadcast %cst_18 : f32 to vector<8x10xf32>
    %65 = arith.maximumf %63, %64 : vector<8x10xf32>
    %cst_19 = arith.constant dense<0xFF800000> : vector<8xf32>
    %66 = vector.multi_reduction <maximumf>, %65, %cst_19 [1] : vector<8x10xf32> to vector<8xf32>
    %67 = vector.shape_cast %66 : vector<8xf32> to vector<8x1xf32>
    %68 = vector.broadcast %67 : vector<8x1xf32> to vector<8x10xf32>
    %69 = arith.subf %65, %68 : vector<8x10xf32>
    %70 = math.exp %69 : vector<8x10xf32>
    %cst_20 = arith.constant dense<0.000000e+00> : vector<8xf32>
    %71 = vector.multi_reduction <add>, %70, %cst_20 [1] : vector<8x10xf32> to vector<8xf32>
    %72 = vector.shape_cast %71 : vector<8xf32> to vector<8x1xf32>
    %73 = tpu.reciprocal %72 {approx = true} : vector<8x1xf32> -> vector<8x1xf32>
    %74 = vector.broadcast %73 : vector<8x1xf32> to vector<8x10xf32>
    %75 = arith.mulf %70, %74 : vector<8x10xf32>
    %76 = vector.extract_strided_slice %18 {offsets = [0, 32], sizes = [8, 48], strides = [1, 1]} : vector<8x80xf32> to vector<8x48xf32>
    %77 = vector.extract_strided_slice %19 {offsets = [0, 0], sizes = [8, 48], strides = [1, 1]} : vector<8x96xf32> to vector<8x48xf32>
    %78 = arith.addf %76, %77 : vector<8x48xf32>
    %79 = vector.broadcast %14 : vector<1x48xf32> to vector<8x48xf32>
    %80 = arith.addf %78, %79 : vector<8x48xf32>
    %cst_21 = arith.constant dense<0.000000e+00> : vector<48xf32>
    %81 = vector.multi_reduction <add>, %80, %cst_21 [0] : vector<8x48xf32> to vector<48xf32>
    %82 = vector.shape_cast %81 : vector<48xf32> to vector<1x48xf32>
    %cst_22 = arith.constant 8.000000e+00 : f32
    %83 = vector.broadcast %cst_22 : f32 to vector<1x48xf32>
    %84 = arith.divf %82, %83 : vector<1x48xf32>
    %85 = vector.broadcast %84 : vector<1x48xf32> to vector<8x48xf32>
    %86 = arith.subf %80, %85 : vector<8x48xf32>
    %87 = arith.mulf %86, %86 : vector<8x48xf32>
    %cst_23 = arith.constant dense<0.000000e+00> : vector<48xf32>
    %88 = vector.multi_reduction <add>, %87, %cst_23 [0] : vector<8x48xf32> to vector<48xf32>
    %89 = vector.shape_cast %88 : vector<48xf32> to vector<1x48xf32>
    %cst_24 = arith.constant 8.000000e+00 : f32
    %90 = vector.broadcast %cst_24 : f32 to vector<1x48xf32>
    %91 = arith.divf %89, %90 : vector<1x48xf32>
    %92 = vector.broadcast %84 : vector<1x48xf32> to vector<8x48xf32>
    %93 = arith.subf %80, %92 : vector<8x48xf32>
    %cst_25 = arith.constant 9.99999974E-6 : f32
    %94 = vector.broadcast %cst_25 : f32 to vector<1x48xf32>
    %95 = arith.addf %91, %94 : vector<1x48xf32>
    %96 = math.rsqrt %95 : vector<1x48xf32>
    %97 = vector.broadcast %96 : vector<1x48xf32> to vector<8x48xf32>
    %98 = arith.mulf %93, %97 : vector<8x48xf32>
    %cst_26 = arith.constant 0.000000e+00 : f32
    %99 = vector.broadcast %cst_26 : f32 to vector<8x48xf32>
    %100 = arith.maximumf %98, %99 : vector<8x48xf32>
    %cst_27 = arith.constant dense<0.000000e+00> : vector<8x32xf32>
    %101 = tpu.matmul %100, %9, %cst_27 {dimension_numbers = #tpu.dot_dimension_numbers<[1], [0], [0], [1], [0, 0, 1, 1], [], []>} : vector<8x48xf32>, vector<48x32xf32>, vector<8x32xf32> -> vector<8x32xf32>
    %102 = vector.broadcast %15 : vector<1x32xf32> to vector<8x32xf32>
    %103 = arith.addf %101, %102 : vector<8x32xf32>
    %104 = vector.extract_strided_slice %103 {offsets = [0, 0], sizes = [8, 16], strides = [1, 1]} : vector<8x32xf32> to vector<8x16xf32>
    %105 = vector.extract_strided_slice %103 {offsets = [0, 16], sizes = [8, 16], strides = [1, 1]} : vector<8x32xf32> to vector<8x16xf32>
    %cst_28 = arith.constant 5.000000e-01 : f32
    %106 = vector.broadcast %cst_28 : f32 to vector<8x16xf32>
    %107 = arith.mulf %106, %105 : vector<8x16xf32>
    %108 = math.exp %107 : vector<8x16xf32>
    %109 = arith.mulf %3, %108 : vector<8x16xf32>
    %110 = arith.addf %104, %109 : vector<8x16xf32>
    %cst_29 = arith.constant dense<0.000000e+00> : vector<8x48xf32>
    %111 = tpu.matmul %110, %10, %cst_29 {dimension_numbers = #tpu.dot_dimension_numbers<[1], [0], [0], [1], [0, 0, 1, 1], [], []>} : vector<8x16xf32>, vector<16x48xf32>, vector<8x48xf32> -> vector<8x48xf32>
    %112 = vector.extract_strided_slice %19 {offsets = [0, 48], sizes = [8, 48], strides = [1, 1]} : vector<8x96xf32> to vector<8x48xf32>
    %113 = arith.addf %111, %112 : vector<8x48xf32>
    %114 = vector.broadcast %16 : vector<1x48xf32> to vector<8x48xf32>
    %115 = arith.addf %113, %114 : vector<8x48xf32>
    %cst_30 = arith.constant dense<0.000000e+00> : vector<48xf32>
    %116 = vector.multi_reduction <add>, %115, %cst_30 [0] : vector<8x48xf32> to vector<48xf32>
    %117 = vector.shape_cast %116 : vector<48xf32> to vector<1x48xf32>
    %cst_31 = arith.constant 8.000000e+00 : f32
    %118 = vector.broadcast %cst_31 : f32 to vector<1x48xf32>
    %119 = arith.divf %117, %118 : vector<1x48xf32>
    %120 = vector.broadcast %119 : vector<1x48xf32> to vector<8x48xf32>
    %121 = arith.subf %115, %120 : vector<8x48xf32>
    %122 = arith.mulf %121, %121 : vector<8x48xf32>
    %cst_32 = arith.constant dense<0.000000e+00> : vector<48xf32>
    %123 = vector.multi_reduction <add>, %122, %cst_32 [0] : vector<8x48xf32> to vector<48xf32>
    %124 = vector.shape_cast %123 : vector<48xf32> to vector<1x48xf32>
    %cst_33 = arith.constant 8.000000e+00 : f32
    %125 = vector.broadcast %cst_33 : f32 to vector<1x48xf32>
    %126 = arith.divf %124, %125 : vector<1x48xf32>
    %127 = vector.broadcast %119 : vector<1x48xf32> to vector<8x48xf32>
    %128 = arith.subf %115, %127 : vector<8x48xf32>
    %cst_34 = arith.constant 9.99999974E-6 : f32
    %129 = vector.broadcast %cst_34 : f32 to vector<1x48xf32>
    %130 = arith.addf %126, %129 : vector<1x48xf32>
    %131 = math.rsqrt %130 : vector<1x48xf32>
    %132 = vector.broadcast %131 : vector<1x48xf32> to vector<8x48xf32>
    %133 = arith.mulf %128, %132 : vector<8x48xf32>
    %cst_35 = arith.constant 0.000000e+00 : f32
    %134 = vector.broadcast %cst_35 : f32 to vector<8x48xf32>
    %135 = arith.maximumf %133, %134 : vector<8x48xf32>
    %cst_36 = arith.constant dense<0.000000e+00> : vector<8x64xf32>
    %136 = tpu.matmul %135, %11, %cst_36 {dimension_numbers = #tpu.dot_dimension_numbers<[1], [0], [0], [1], [0, 0, 1, 1], [], []>} : vector<8x48xf32>, vector<48x64xf32>, vector<8x64xf32> -> vector<8x64xf32>
    %137 = vector.broadcast %17 : vector<1x64xf32> to vector<8x64xf32>
    %138 = arith.addf %136, %137 : vector<8x64xf32>
    %cst_37 = arith.constant 5.000000e-01 : f32
    %139 = vector.broadcast %cst_37 : f32 to vector<8x64xf32>
    %140 = arith.mulf %139, %138 : vector<8x64xf32>
    %141 = math.tanh %140 : vector<8x64xf32>
    %cst_38 = arith.constant 5.000000e-01 : f32
    %142 = vector.broadcast %cst_38 : f32 to vector<8x64xf32>
    %143 = arith.mulf %142, %141 : vector<8x64xf32>
    %cst_39 = arith.constant 5.000000e-01 : f32
    %144 = vector.broadcast %cst_39 : f32 to vector<8x64xf32>
    %145 = arith.addf %144, %143 : vector<8x64xf32>
    %cst_40 = arith.constant 0.000000e+00 : f32
    %146 = vector.broadcast %cst_40 : f32 to vector<8x6xf32>
    %147 = tpu.concatenate %145, %104, %105, %110, %75, %146 in 1 : vector<8x64xf32>, vector<8x16xf32>, vector<8x16xf32>, vector<8x16xf32>, vector<8x10xf32>, vector<8x6xf32> -> vector<8x128xf32>
    %c0_41 = arith.constant 0 : index
    %c0_42 = arith.constant 0 : index
    %148 = vector.load %arg3[%c0_41, %c0_42] : memref<8x128xf32, #tpu.memory_space<vmem>>, vector<8x128xf32>
    tpu.vector_store %arg3[%c0_41, %c0_42], %147 {strides = array<i32>} : memref<8x128xf32, #tpu.memory_space<vmem>>, vector<8x128xf32>,
    return
  }
}

</mosaic_0001>

<llo_original>
// kernel: tpu_custom_call.1
$region0: #{tpu_custom_call.1}
  #allocation0 [shape = 'u32[]', space=smem, size = 0x4, offset = 0x4, fixed_abs, tag = 'smem constant byte address 0x4 - core index']
  #allocation1 [shape = 'u32[72,128]{1,0:T(1,128)}', space=vmem, size = 0x9000, scoped, tag = 'internal scratch']
  %s0 = inlined_call_operand.hbm [shape: f32[8,128], index: 0, kind: input, shape index: {}]
  %s1 = inlined_call_operand.hbm [shape: f32[224,128], index: 1, kind: input, shape index: {}]
  %s2 = inlined_call_operand.hbm [shape: f32[8,128], index: 2, kind: input, shape index: {}]
  %s3 = inlined_call_operand.hbm [shape: f32[8,128], index: 3, kind: output, shape index: {}]
  %s4 = sld [smem:[#allocation0]]
  $region34: #{tpu_custom_call.1} parent=0
    _
  %s6 = ssub.s32 1, %s4
  %s7 = scalar_select 0, %s6, %s4
  $region1: #{tpu_custom_call.1} parent=0
    #allocation2 [shape = 'u8[4096]{0}', space=vmem, size = 0x1000, scoped, tag = 'input window, operand 0, single buffered']
    #allocation3 [shape = 's32[1]{0}', space=sflag, size = 0x4, scoped, tag = 'scoped memory for tpu_custom_call.1']
    #allocation4 [shape = 's32[1]{0}', space=sflag, size = 0x4, scoped, tag = 'scoped memory for tpu_custom_call.1']
    #allocation5 [shape = 'u8[114688]{0}', space=vmem, size = 0x1c000, scoped, tag = 'input window, operand 1, single buffered']
    #allocation6 [shape = 's32[1]{0}', space=sflag, size = 0x4, scoped, tag = 'scoped memory for tpu_custom_call.1']
    #allocation7 [shape = 'u8[4096]{0}', space=vmem, size = 0x1000, scoped, tag = 'input window, operand 2, single buffered']
    #allocation8 [shape = 'u8[4096]{0}', space=vmem, size = 0x1000, scoped, tag = 'output window, operand 0, single buffered']
    %8 = vsyncpa [#allocation3], 0
    %9 = vsyncpa [#allocation6], 0
    %10 = vsyncpa [#allocation4], 0
    // Predicated region
    $region2: #{tpu_custom_call.1} parent=1 // pred_check
      _
    $region3: #{tpu_custom_call.1} parent=1 // pred_check_branch
      %12 = sbr.rel (0) target = $region5
    $region4: #{tpu_custom_call.1} parent=1 // pred_region
      %14 = vsyncadd [#allocation3], 0
      %s16 = sshll.u32 %s0, 4
      %s17 = int_to_ptr.hbm [resolvable:$true] %s16
      %s18 = sshll.u32 [#allocation2], 4
      %s19 = int_to_ptr.vmem [resolvable:$true] %s18
      %21 = dma.hbm_to_vmem [thread:$0]  %s17, 128, %s19, [#allocation3]
    $region5: #{tpu_custom_call.1} parent=1 // pred_fallthru
      _
    // Predicated region
    $region6: #{tpu_custom_call.1} parent=1 // pred_check
      _
    $region7: #{tpu_custom_call.1} parent=1 // pred_check_branch
      %23 = sbr.rel (0) target = $region9
    $region8: #{tpu_custom_call.1} parent=1 // pred_region
      %25 = vsyncadd [#allocation6], 0
      %s26 = sshll.u32 %s1, 4
      %s27 = int_to_ptr.hbm [resolvable:$true] %s26
      %s28 = sshll.u32 [#allocation5], 4
      %s29 = int_to_ptr.vmem [resolvable:$true] %s28
      %34 = dma.hbm_to_vmem [thread:$0]  %s27, 3584, %s29, [#allocation6], 128, 128, 8
    $region9: #{tpu_custom_call.1} parent=1 // pred_fallthru
      _
    // Predicated region
    $region10: #{tpu_custom_call.1} parent=1 // pred_check
      _
    $region11: #{tpu_custom_call.1} parent=1 // pred_check_branch
      %36 = sbr.rel (0) target = $region13
    $region12: #{tpu_custom_call.1} parent=1 // pred_region
      %38 = vsyncadd [#allocation6], 0
      %s40 = sshll.u32 %s2, 4
      %s41 = int_to_ptr.hbm [resolvable:$true] %s40
      %s42 = sshll.u32 [#allocation7], 4
      %s43 = int_to_ptr.vmem [resolvable:$true] %s42
      %45 = dma.hbm_to_vmem [thread:$0]  %s41, 128, %s43, [#allocation6]
    $region13: #{tpu_custom_call.1} parent=1 // pred_fallthru
      _
    // Predicated region
    $region14: #{tpu_custom_call.1} parent=1 // pred_check
      _
    $region15: #{tpu_custom_call.1} parent=1 // pred_check_branch
      %47 = sbr.rel (0) target = $region17
    $region16: #{tpu_custom_call.1} parent=1 // pred_region
      %49 = dma.done [#allocation3], 128
    $region17: #{tpu_custom_call.1} parent=1 // pred_fallthru
      _
    // Predicated region
    $region18: #{tpu_custom_call.1} parent=1 // pred_check
      _
    $region19: #{tpu_custom_call.1} parent=1 // pred_check_branch
      %51 = sbr.rel (0) target = $region21
    $region20: #{tpu_custom_call.1} parent=1 // pred_region
      %53 = dma.done [#allocation6], 3584
    $region21: #{tpu_custom_call.1} parent=1 // pred_fallthru
      _
    // Predicated region
    $region22: #{tpu_custom_call.1} parent=1 // pred_check
      _
    $region23: #{tpu_custom_call.1} parent=1 // pred_check_branch
      %55 = sbr.rel (0) target = $region25
    $region24: #{tpu_custom_call.1} parent=1 // pred_region
      %57 = dma.done [#allocation6], 128
    $region25: #{tpu_custom_call.1} parent=1 // pred_fallthru
      _
    %v58 = vld [vmem:[#allocation2] sm:$0xff]
    %v59 = vld [vmem:[#allocation5] sm:$0xff]
    %v60 = vld [vmem:[#allocation5 + $0x8] sm:$0xff]
    %v61 = vld [vmem:[#allocation5 + $0x10] sm:$0xff]
    %v62 = vld [vmem:[#allocation5 + $0x18] sm:$0xff]
    %v63 = vld [vmem:[#allocation5 + $0x20] sm:$0xff]
    %v64 = vld [vmem:[#allocation5 + $0x28] sm:$0xff]
    %v65 = vld [vmem:[#allocation5 + $0x30] sm:$0xff]
    %v66 = vld [vmem:[#allocation5 + $0x38] sm:$0xff]
    %v67 = vld [vmem:[#allocation5 + $0x40] sm:$0xff]
    %v68 = vld [vmem:[#allocation5 + $0x48] sm:$0xff]
    %v69 = vld [vmem:[#allocation5 + $0x50] sm:$0xff]
    %v70 = vld [vmem:[#allocation5 + $0x58] sm:$0xff]
    %v71 = vld [vmem:[#allocation5 + $0x60] sm:$0xff]
    %v72 = vld [vmem:[#allocation5 + $0x68] sm:$0xff]
    %v73 = vld [vmem:[#allocation5 + $0x70] sm:$0xff]
    %v74 = vld [vmem:[#allocation5 + $0x78] sm:$0xff]
    %v75 = vld [vmem:[#allocation5 + $0x80] sm:$0xff]
    %v76 = vld [vmem:[#allocation5 + $0x88] sm:$0xff]
    %v77 = vld [vmem:[#allocation5 + $0x90] sm:$0xff]
    %v78 = vld [vmem:[#allocation5 + $0x98] sm:$0xff]
    %v79 = vld [vmem:[#allocation5 + $0xa0] sm:$0xff]
    %v80 = vld [vmem:[#allocation5 + $0xa8] sm:$0xff]
    %v81 = vld [vmem:[#allocation5 + $0xb0] sm:$0xff]
    %v82 = vld [vmem:[#allocation5 + $0xb8] sm:$0xff]
    %v83 = vld [vmem:[#allocation5 + $0xc0] sm:$0xff]
    %v84 = vld [vmem:[#allocation5 + $0xc8] sm:$0xff]
    %v85 = vld [vmem:[#allocation5 + $0xd0] sm:$0xff]
    %v86 = vld [vmem:[#allocation5 + $0xd8] sm:$0xff]
    %v87 = vld [vmem:[#allocation7] sm:$0xff]
    %vm88 = vcmask 523264
    %v90 = vsel %vm88, %v58, 0
    %92 = vmatpush.msra.mxu0 0.0
    %93 = vmatpush.msra.mxu0 0.0
    %94 = vmatpush.msra.mxu0 0.0
    %95 = vmatpush.msra.mxu0 0.0
    %96 = vmatpush.msra.mxu0 0.0
    %97 = vmatpush.msra.mxu0 0.0
    %98 = vmatpush.msra.mxu0 0.0
    %99 = vmatpush.msra.mxu0 0.0
    %100 = vmatpush.msra.mxu0 %v66
    %101 = vmatpush.msra.mxu0 %v65
    %102 = vmatpush.msra.mxu0 %v64
    %103 = vmatpush.msra.mxu0 %v63
    %104 = vmatpush.msra.mxu0 %v62
    %105 = vmatpush.msra.mxu0 %v61
    %106 = vmatpush.msra.mxu0 %v60
    %107 = vmatpush.msra.mxu0 %v59
    %108 = vmatmul.f32.gmra.mxu0 %v90
    %v109 = vpop.f32.mrf.mxu0
    %v110 = vadd.f32 0.0, %v109
    %111 = vdwg.mxu0
    %112 = vrot.lane.b32.xlu0 %v58, 64
    %v113 = vpop.permute.xlu0 %112
    %vm114 = vcmask 130048
    %v115 = vsel %vm114, %v113, 0
    %117 = vmatpush.msra.mxu0 0.0
    %118 = vmatpush.msra.mxu0 0.0
    %119 = vmatpush.msra.mxu0 0.0
    %120 = vmatpush.msra.mxu0 0.0
    %121 = vmatpush.msra.mxu0 0.0
    %122 = vmatpush.msra.mxu0 0.0
    %123 = vmatpush.msra.mxu0 0.0
    %124 = vmatpush.msra.mxu0 0.0
    %125 = vmatpush.msra.mxu0 0.0
    %126 = vmatpush.msra.mxu0 0.0
    %127 = vmatpush.msra.mxu0 0.0
    %128 = vmatpush.msra.mxu0 0.0
    %129 = vmatpush.msra.mxu0 0.0
    %130 = vmatpush.msra.mxu0 0.0
    %131 = vmatpush.msra.mxu0 %v68
    %132 = vmatpush.msra.mxu0 %v67
    %133 = vmatmul.f32.gmra.mxu0 %v115
    %v134 = vpop.f32.mrf.mxu0
    %v135 = vadd.f32 0.0, %v134
    %136 = vdwg.mxu0
    %v137 = vperm.slane %v87, 0
    %v138 = vadd.f32 %v110, %v137
    %vm139 = vcmask 261120
    %v140 = vsel %vm139, %v138, 0.0
    %v141 = vrot.slane %v140, 4
    %v142 = vadd.f32 %v140, %v141
    %v143 = vrot.slane %v142, 2
    %v144 = vadd.f32 %v142, %v143
    %v145 = vrot.slane %v144, 1
    %v146 = vadd.f32 %v144, %v145
    %v147 = vrcp.pop 8.0
    %v148 = vmul.f32 8.0, %v147
    %v149 = vsub.f32 1.0, %v148
    %v150 = vmul.f32 %v147, %v149
    %v151 = vadd.f32 %v147, %v150
    %vm152 = vweird.f32 %v147
    %v153 = vsel %vm152, %v147, %v151
    %v154 = vmul.f32 %v146, %v153
    %v155 = vsub.f32 %v138, %v154
    %v156 = vmul.f32 %v155, %v155
    %v157 = vsel %vm139, %v156, 0.0
    %v158 = vrot.slane %v157, 4
    %v159 = vadd.f32 %v157, %v158
    %v160 = vrot.slane %v159, 2
    %v161 = vadd.f32 %v159, %v160
    %v162 = vrot.slane %v161, 1
    %v163 = vadd.f32 %v161, %v162
    %v164 = vmul.f32 %v163, %v153
    %v165 = vadd.f32 %v164, 1e-05
    %v166 = vrsqrt.pop %v165
    %v167 = vmul.f32 %v166, %v165
    %v168 = vmul.f32 %v167, %v166
    %v169 = vmul.f32 0.5, %v168
    %v170 = vsub.f32 1.5, %v169
    %v171 = vmul.f32 %v166, %v170
    %vm172 = vweird.f32 %v165
    %vm173 = vweird.f32 %v166
    %vm174 = vmor %vm172, %vm173
    %v175 = vsel %vm174, %v166, %v171
    %v176 = vmul.f32 %v155, %v175
    %v177 = vmax.f32 %v176, 0.0
    %v178 = vperm.slane %v87, 1
    %v180 = vsel %vm139, %v177, 0
    %182 = vmatpush.msra.mxu0 0.0
    %183 = vmatpush.msra.mxu0 0.0
    %184 = vmatpush.msra.mxu0 0.0
    %185 = vmatpush.msra.mxu0 0.0
    %186 = vmatpush.msra.mxu0 0.0
    %187 = vmatpush.msra.mxu0 0.0
    %188 = vmatpush.msra.mxu0 0.0
    %189 = vmatpush.msra.mxu0 0.0
    %190 = vmatpush.msra.mxu0 0.0
    %191 = vmatpush.msra.mxu0 0.0
    %192 = vmatpush.msra.mxu0 0.0
    %193 = vmatpush.msra.mxu0 0.0
    %194 = vmatpush.msra.mxu0 %v72
    %195 = vmatpush.msra.mxu0 %v71
    %196 = vmatpush.msra.mxu0 %v70
    %197 = vmatpush.msra.mxu0 %v69
    %198 = vmatmul.f32.gmra.mxu0 %v180
    %v199 = vpop.f32.mrf.mxu0
    %v200 = vadd.f32 %v178, %v199
    %201 = vdwg.mxu0
    %vm202 = vcmask 80896
    %v203 = vsel %vm202, %v200, 0.0
    %v204 = vrot.slane %v203, 4
    %v205 = vadd.f32 %v203, %v204
    %v206 = vrot.slane %v205, 2
    %v207 = vadd.f32 %v205, %v206
    %v208 = vrot.slane %v207, 1
    %v209 = vadd.f32 %v207, %v208
    %v210 = vmul.f32 %v209, %v153
    %v211 = vsub.f32 %v200, %v210
    %v212 = vmul.f32 %v211, %v211
    %v213 = vsel %vm202, %v212, 0.0
    %v214 = vrot.slane %v213, 4
    %v215 = vadd.f32 %v213, %v214
    %v216 = vrot.slane %v215, 2
    %v217 = vadd.f32 %v215, %v216
    %v218 = vrot.slane %v217, 1
    %v219 = vadd.f32 %v217, %v218
    %v220 = vmul.f32 %v219, %v153
    %v221 = vadd.f32 %v220, 1e-05
    %v222 = vrsqrt.pop %v221
    %v223 = vmul.f32 %v222, %v221
    %v224 = vmul.f32 %v223, %v222
    %v225 = vmul.f32 0.5, %v224
    %v226 = vsub.f32 1.5, %v225
    %v227 = vmul.f32 %v222, %v226
    %vm228 = vweird.f32 %v221
    %vm229 = vweird.f32 %v222
    %vm230 = vmor %vm228, %vm229
    %v231 = vsel %vm230, %v222, %v227
    %v232 = vmul.f32 %v211, %v231
    %v233 = vmax.f32 %v232, 0.0
    %v234 = vsel %vm202, %v233, -inf
    %235 = vmax.xlane.f32.xlu0 %v234
    %v236 = vpop.xlane.xlu0 %235
    %v237 = vsub.f32 %v233, %v236
    %v238 = vmul.f32 %v237, 1.442695
    %v239 = vpow.pop %v238
    %v240 = vsel %vm202, %v239, 0.0
    %241 = vadd.xlane.f32.xlu0 %v240
    %v242 = vpop.xlane.xlu0 %241
    %v243 = vrcp.pop %v242
    %v244 = vmul.f32 %v239, %v243
    %246 = vrot.lane.b32.xlu0 %v135, 32
    %v247 = vpop.permute.xlu0 %246
    %v249 = vadd.f32 %v110, %v247
    %v250 = vperm.slane %v87, 2
    %252 = vrot.lane.b32.xlu0 %v250, 32
    %v253 = vpop.permute.xlu0 %252
    %v255 = vadd.f32 %v249, %v253
    %vm256 = vcmask 654592
    %v257 = vsel %vm256, %v255, 0.0
    %v258 = vrot.slane %v257, 4
    %v259 = vadd.f32 %v257, %v258
    %v260 = vrot.slane %v259, 2
    %v261 = vadd.f32 %v259, %v260
    %v262 = vrot.slane %v261, 1
    %v263 = vadd.f32 %v261, %v262
    %v264 = vmul.f32 %v263, %v153
    %v265 = vsub.f32 %v255, %v264
    %v266 = vmul.f32 %v265, %v265
    %v267 = vsel %vm256, %v266, 0.0
    %v268 = vrot.slane %v267, 4
    %v269 = vadd.f32 %v267, %v268
    %v270 = vrot.slane %v269, 2
    %v271 = vadd.f32 %v269, %v270
    %v272 = vrot.slane %v271, 1
    %v273 = vadd.f32 %v271, %v272
    %v274 = vmul.f32 %v273, %v153
    %v275 = vadd.f32 %v274, 1e-05
    %v276 = vrsqrt.pop %v275
    %v277 = vmul.f32 %v276, %v275
    %v278 = vmul.f32 %v277, %v276
    %v279 = vmul.f32 0.5, %v278
    %v280 = vsub.f32 1.5, %v279
    %v281 = vmul.f32 %v276, %v280
    %vm282 = vweird.f32 %v275
    %vm283 = vweird.f32 %v276
    %vm284 = vmor %vm282, %vm283
    %v285 = vsel %vm284, %v276, %v281
    %v286 = vmul.f32 %v265, %v285
    %v287 = vmax.f32 %v286, 0.0
    %v288 = vperm.slane %v87, 3
    %290 = vrot.lane.b32.xlu0 %v287, 96
    %v291 = vpop.permute.xlu0 %290
    %vm292 = vcmask 392192
    %v293 = vsel %vm292, %v291, 0
    %295 = vmatpush.msra.mxu0 0.0
    %296 = vmatpush.msra.mxu0 0.0
    %297 = vmatpush.msra.mxu0 0.0
    %298 = vmatpush.msra.mxu0 0.0
    %299 = vmatpush.msra.mxu0 0.0
    %300 = vmatpush.msra.mxu0 0.0
    %301 = vmatpush.msra.mxu0 0.0
    %302 = vmatpush.msra.mxu0 0.0
    %303 = vmatpush.msra.mxu0 0.0
    %304 = vmatpush.msra.mxu0 0.0
    %305 = vmatpush.msra.mxu0 %v78
    %306 = vmatpush.msra.mxu0 %v77
    %307 = vmatpush.msra.mxu0 %v76
    %308 = vmatpush.msra.mxu0 %v75
    %309 = vmatpush.msra.mxu0 %v74
    %310 = vmatpush.msra.mxu0 %v73
    %311 = vmatmul.f32.gmra.mxu0 %v293
    %v312 = vpop.f32.mrf.mxu0
    %v313 = vadd.f32 %v288, %v312
    %314 = vdwg.mxu0
    %v315 = vmul.f32 %v313, 0.5
    %v316 = vmul.f32 %v315, 1.442695
    %v317 = vpow.pop %v316
    %319 = vrot.lane.b32.xlu0 %v317, 64
    %v320 = vpop.permute.xlu0 %319
    %v322 = vmul.f32 %v58, %v320
    %324 = vrot.lane.b32.xlu0 %v322, 48
    %v325 = vpop.permute.xlu0 %324
    %v327 = vadd.f32 %v313, %v325
    %328 = vrot.lane.b32.xlu0 %v135, 80
    %v329 = vpop.permute.xlu0 %328
    %v332 = vsel %vm114, %v327, 0
    %334 = vmatpush.msra.mxu0 0.0
    %335 = vmatpush.msra.mxu0 0.0
    %336 = vmatpush.msra.mxu0 0.0
    %337 = vmatpush.msra.mxu0 0.0
    %338 = vmatpush.msra.mxu0 0.0
    %339 = vmatpush.msra.mxu0 0.0
    %340 = vmatpush.msra.mxu0 0.0
    %341 = vmatpush.msra.mxu0 0.0
    %342 = vmatpush.msra.mxu0 0.0
    %343 = vmatpush.msra.mxu0 0.0
    %344 = vmatpush.msra.mxu0 0.0
    %345 = vmatpush.msra.mxu0 0.0
    %346 = vmatpush.msra.mxu0 0.0
    %347 = vmatpush.msra.mxu0 0.0
    %348 = vmatpush.msra.mxu0 %v80
    %349 = vmatpush.msra.mxu0 %v79
    %350 = vmatmul.f32.gmra.mxu0 %v332
    %v351 = vpop.f32.mrf.mxu0
    %v352 = vadd.f32 %v329, %v351
    %353 = vdwg.mxu0
    %v354 = vperm.slane %v87, 4
    %v355 = vadd.f32 %v352, %v354
    %v356 = vsel %vm292, %v355, 0.0
    %v357 = vrot.slane %v356, 4
    %v358 = vadd.f32 %v356, %v357
    %v359 = vrot.slane %v358, 2
    %v360 = vadd.f32 %v358, %v359
    %v361 = vrot.slane %v360, 1
    %v362 = vadd.f32 %v360, %v361
    %v363 = vmul.f32 %v362, %v153
    %v364 = vsub.f32 %v355, %v363
    %v365 = vmul.f32 %v364, %v364
    %v366 = vsel %vm292, %v365, 0.0
    %v367 = vrot.slane %v366, 4
    %v368 = vadd.f32 %v366, %v367
    %v369 = vrot.slane %v368, 2
    %v370 = vadd.f32 %v368, %v369
    %v371 = vrot.slane %v370, 1
    %v372 = vadd.f32 %v370, %v371
    %v373 = vmul.f32 %v372, %v153
    %v374 = vadd.f32 %v373, 1e-05
    %v375 = vrsqrt.pop %v374
    %v376 = vmul.f32 %v375, %v374
    %v377 = vmul.f32 %v376, %v375
    %v378 = vmul.f32 0.5, %v377
    %v379 = vsub.f32 1.5, %v378
    %v380 = vmul.f32 %v375, %v379
    %vm381 = vweird.f32 %v374
    %vm382 = vweird.f32 %v375
    %vm383 = vmor %vm381, %vm382
    %v384 = vsel %vm383, %v375, %v380
    %v385 = vmul.f32 %v364, %v384
    %v386 = vmax.f32 %v385, 0.0
    %v387 = vperm.slane %v87, 5
    %v389 = vsel %vm292, %v386, 0
    %391 = vmatpush.msra.mxu0 0.0
    %392 = vmatpush.msra.mxu0 0.0
    %393 = vmatpush.msra.mxu0 0.0
    %394 = vmatpush.msra.mxu0 0.0
    %395 = vmatpush.msra.mxu0 0.0
    %396 = vmatpush.msra.mxu0 0.0
    %397 = vmatpush.msra.mxu0 0.0
    %398 = vmatpush.msra.mxu0 0.0
    %399 = vmatpush.msra.mxu0 0.0
    %400 = vmatpush.msra.mxu0 0.0
    %401 = vmatpush.msra.mxu0 %v86
    %402 = vmatpush.msra.mxu0 %v85
    %403 = vmatpush.msra.mxu0 %v84
    %404 = vmatpush.msra.mxu0 %v83
    %405 = vmatpush.msra.mxu0 %v82
    %406 = vmatpush.msra.mxu0 %v81
    %407 = vmatmul.f32.gmra.mxu0 %v389
    %v408 = vpop.f32.mrf.mxu0
    %v409 = vadd.f32 %v387, %v408
    %410 = vdwg.mxu0
    %v411 = vmul.f32 %v409, 0.5
    %v412 = vtanh.pop %v411
    %v413 = vmul.f32 %v412, 0.5
    %v414 = vadd.f32 %v413, 0.5
    %416 = vrot.lane.b32.xlu0 %v313, 64
    %v417 = vpop.permute.xlu0 %416
    %419 = vrot.lane.b32.xlu0 %v327, 96
    %v420 = vpop.permute.xlu0 %419
    %423 = vrot.lane.b32.xlu0 %v244, 112
    %v424 = vpop.permute.xlu0 %423
    %v426 = vsel %vm88, %v414, %v417
    %vm427 = vcmask 654336
    %v428 = vsel %vm427, %v426, %v417
    %vm429 = vcmask 785408
    %v430 = vsel %vm429, %v428, %v420
    %vm431 = vcmask 916480
    %v432 = vsel %vm431, %v430, %v424
    %vm433 = vcmask 998400
    %v434 = vsel %vm433, %v432, 0.0
    %435 = vst [vmem:[#allocation8] sm:$0xff] %v434
    // Predicated region
    $region26: #{tpu_custom_call.1} parent=1 // pred_check
      _
    $region27: #{tpu_custom_call.1} parent=1 // pred_check_branch
      %437 = sbr.rel (0) target = $region29
    $region28: #{tpu_custom_call.1} parent=1 // pred_region
      %439 = vsyncadd [#allocation4], 0
      %s441 = sshll.u32 [#allocation8], 4
      %s442 = int_to_ptr.vmem [resolvable:$true] %s441
      %s443 = sshll.u32 %s3, 4
      %s444 = int_to_ptr.hbm [resolvable:$true] %s443
      %446 = dma.vmem_to_hbm [thread:$0]  %s442, 128, %s444, [#allocation4]
    $region29: #{tpu_custom_call.1} parent=1 // pred_fallthru
      _
    // Predicated region
    $region30: #{tpu_custom_call.1} parent=1 // pred_check
      _
    $region31: #{tpu_custom_call.1} parent=1 // pred_check_branch
      %448 = sbr.rel (0) target = $region33
    $region32: #{tpu_custom_call.1} parent=1 // pred_region
      %450 = dma.done [#allocation4], 128
    $region33: #{tpu_custom_call.1} parent=1 // pred_fallthru
      _
    %451 = vsyncpa [#allocation3], 1
    %452 = vsyncpa [#allocation6], 1
    %453 = vsyncpa [#allocation4], 1

</llo_original>
